<compile_context>
chip_gen: v6e
topology: v6e:2x2x1
jax: 0.10.0
libtpu: 0.0.40
codegen_flags: <defaults>
</compile_context>

<pallas_src>
import jax
import jax.numpy as jnp
from jax import lax
from jax.experimental import pallas as pl
from jax.experimental.pallas import tpu as pltpu


def _linear_kernel(x_ref, w_ref, b_ref, o_ref):
    """out = x @ W^T + b, single step, everything resident in VMEM.

    x_ref : (B, K)  f32  flattened input
    w_ref : (N, K)  f32  nn.Linear weight in its native (out, in) layout
    b_ref : (1, N)  f32  bias
    o_ref : (B, N)  f32  output
    """
    x_bf16 = x_ref[...].astype(jnp.bfloat16)   # VPU cast, MXU-native operand dtype
    w_bf16 = w_ref[...].astype(jnp.bfloat16)
    acc = lax.dot_general(
        x_bf16,
        w_bf16,
        dimension_numbers=(((1,), (1,)), ((), ())),  # contract K of both -> x @ W^T
        preferred_element_type=jnp.float32,          # f32 accumulate on the MXU
    )
    o_ref[...] = (acc + b_ref[...]).astype(o_ref.dtype)


def client_classifier_forward(x, w, b):
    """Forward pass of ClientClassifier.

    x: (B, C, H, W) float32 (NCHW, like the PyTorch module)
    w: (N, K) float32  -- nn.Linear weight, K = C*H*W = 4096, N = 10
    b: (N,)   float32  -- nn.Linear bias
    returns: (B, N) float32
    """
    B = x.shape[0]
    K = x.shape[1] * x.shape[2] * x.shape[3]
    N, Kw = w.shape
    assert K == Kw, f"flattened dim {K} != weight in_features {Kw}"

    # torch.flatten(x, 1) on contiguous NCHW == row-major reshape (free in XLA).
    x_flat = x.reshape(B, K)
    b2 = b.reshape(1, N)

    return pl.pallas_call(
        _linear_kernel,
        out_shape=jax.ShapeDtypeStruct((B, N), jnp.float32),
        # Single full-array block, no grid: no per-step pipeline overhead.
        in_specs=[
            pl.BlockSpec(memory_space=pltpu.MemorySpace.VMEM),
            pl.BlockSpec(memory_space=pltpu.MemorySpace.VMEM),
            pl.BlockSpec(memory_space=pltpu.MemorySpace.VMEM),
        ],
        out_specs=pl.BlockSpec(memory_space=pltpu.MemorySpace.VMEM),
    )(x_flat, w, b2)


if __name__ == "__main__":
    key = jax.random.PRNGKey(0)
    kx, kw, kb = jax.random.split(key, 3)

    # Shapes implied by the module: flatten(x, 1) must give 4*4*256 = 4096.
    B, C, H, W = 2, 256, 4, 4
    x = jax.random.normal(kx, (B, C, H, W), dtype=jnp.float32)

    N, K = 10, C * H * W
    bound = 1.0 / float(jnp.sqrt(jnp.float32(K)))
    w = jax.random.uniform(kw, (N, K), dtype=jnp.float32, minval=-bound, maxval=bound)
    b = jax.random.uniform(kb, (N,), dtype=jnp.float32, minval=-bound, maxval=bound)

    out = jax.block_until_ready(jax.jit(client_classifier_forward)(x, w, b))
    assert out.shape == (B, N), f"bad output shape {out.shape}"

    # Reference 1: identical bf16-rounded operands, f32 accumulate -> tight
    # tolerance (validates the kernel's matmul / bias / cast logic).
    xb = x.reshape(B, K).astype(jnp.bfloat16).astype(jnp.float32)
    wb = w.astype(jnp.bfloat16).astype(jnp.float32)
    ref_bf16 = lax.dot_general(
        xb, wb,
        dimension_numbers=(((1,), (1,)), ((), ())),
        preferred_element_type=jnp.float32,
        precision=lax.Precision.HIGHEST,
    ) + b
    assert jnp.allclose(out, ref_bf16, atol=2e-3, rtol=2e-3), "mismatch vs bf16-op reference"

    # Reference 2: full-f32 nn.Linear semantics -> loose tolerance covering the
    # bf16 operand rounding accumulated over a 4096-deep reduction.
    ref_f32 = lax.dot_general(
        x.reshape(B, K), w,
        dimension_numbers=(((1,), (1,)), ((), ())),
        preferred_element_type=jnp.float32,
        precision=lax.Precision.HIGHEST,
    ) + b
    assert jnp.allclose(out, ref_f32, atol=3e-2, rtol=3e-2), "mismatch vs f32 reference"

    print("KERNEL_OK")
</pallas_src>

<mosaic_0001>
module attributes {stable_mosaic.version = 11 : i64} {
  func.func @_linear_kernel(%arg0: memref<2x4096xf32, #tpu.memory_space<vmem>>, %arg1: memref<10x4096xf32, #tpu.memory_space<vmem>>, %arg2: memref<1x10xf32, #tpu.memory_space<vmem>>, %arg3: memref<2x10xf32, #tpu.memory_space<vmem>>) attributes {dimension_semantics = [], scalar_prefetch = 0 : i64, scratch_operands = 0 : i64, tpu.core_type = #tpu.core_type<tc>} {
    %c0 = arith.constant 0 : index
    %c0_0 = arith.constant 0 : index
    %0 = vector.load %arg0[%c0, %c0_0] : memref<2x4096xf32, #tpu.memory_space<vmem>>, vector<2x4096xf32>
    %1 = arith.truncf %0 : vector<2x4096xf32> to vector<2x4096xbf16>
    %c0_1 = arith.constant 0 : index
    %c0_2 = arith.constant 0 : index
    %2 = vector.load %arg1[%c0_1, %c0_2] : memref<10x4096xf32, #tpu.memory_space<vmem>>, vector<10x4096xf32>
    %3 = arith.truncf %2 : vector<10x4096xf32> to vector<10x4096xbf16>
    %cst = arith.constant dense<0.000000e+00> : vector<2x10xf32>
    %4 = tpu.matmul %1, %3, %cst {dimension_numbers = #tpu.dot_dimension_numbers<[1], [1], [0], [0], [0, 0, 1, 0], [], []>} : vector<2x4096xbf16>, vector<10x4096xbf16>, vector<2x10xf32> -> vector<2x10xf32>
    %c0_3 = arith.constant 0 : index
    %c0_4 = arith.constant 0 : index
    %5 = vector.load %arg2[%c0_3, %c0_4] : memref<1x10xf32, #tpu.memory_space<vmem>>, vector<1x10xf32>
    %6 = vector.broadcast %5 : vector<1x10xf32> to vector<2x10xf32>
    %7 = arith.addf %4, %6 : vector<2x10xf32>
    %c0_5 = arith.constant 0 : index
    %c0_6 = arith.constant 0 : index
    %8 = vector.load %arg3[%c0_5, %c0_6] : memref<2x10xf32, #tpu.memory_space<vmem>>, vector<2x10xf32>
    tpu.vector_store %arg3[%c0_5, %c0_6], %7 {strides = array<i32>} : memref<2x10xf32, #tpu.memory_space<vmem>>, vector<2x10xf32>,
    return
  }
}

</mosaic_0001>

<llo_original>
// kernel: client_classifier_forward.1
$region0: #{client_classifier_forward.1}
  #allocation0 [shape = 'u32[]', space=smem, size = 0x4, offset = 0x4, fixed_abs, tag = 'smem constant byte address 0x4 - core index']
  #allocation1 [shape = 'u32[144,128]{1,0:T(1,128)}', space=vmem, size = 0x12000, scoped, tag = 'internal scratch']
  %s0 = inlined_call_operand.vmem [shape: f32[2,4096], index: 0, kind: input, shape index: {}]
  %s1 = inlined_call_operand.vmem [shape: f32[10,4096], index: 1, kind: input, shape index: {}]
  %s2 = inlined_call_operand.vmem [shape: f32[1,10], index: 2, kind: input, shape index: {}]
  %s3 = inlined_call_operand.hbm [shape: f32[2,10], index: 3, kind: output, shape index: {}]
  %s4 = sld [smem:[#allocation0]]
  $region22: #{client_classifier_forward.1} parent=0
    _
  %s6 = ssub.s32 1, %s4
  %s7 = scalar_select 0, %s6, %s4
  $region1: #{client_classifier_forward.1} parent=0
    #allocation2 [shape = 'u8[1024]{0}', space=vmem, size = 0x400, scoped, tag = 'output window, operand 0, single buffered']
    #allocation3 [shape = 's32[1]{0}', space=sflag, size = 0x4, scoped, tag = 'scoped memory for client_classifier_forward.1']
    %8 = vsyncpa [#allocation3], 0
    // Predicated region
    $region2: #{client_classifier_forward.1} parent=1 // pred_check
      _
    $region3: #{client_classifier_forward.1} parent=1 // pred_check_branch
      %10 = sbr.rel (0) target = $region5
    $region4: #{client_classifier_forward.1} parent=1 // pred_region
      _
    $region5: #{client_classifier_forward.1} parent=1 // pred_fallthru
      _
    // Predicated region
    $region6: #{client_classifier_forward.1} parent=1 // pred_check
      _
    $region7: #{client_classifier_forward.1} parent=1 // pred_check_branch
      %12 = sbr.rel (0) target = $region9
    $region8: #{client_classifier_forward.1} parent=1 // pred_region
      _
    $region9: #{client_classifier_forward.1} parent=1 // pred_fallthru
      _
    // Predicated region
    $region10: #{client_classifier_forward.1} parent=1 // pred_check
      _
    $region11: #{client_classifier_forward.1} parent=1 // pred_check_branch
      %14 = sbr.rel (0) target = $region13
    $region12: #{client_classifier_forward.1} parent=1 // pred_region
      _
    $region13: #{client_classifier_forward.1} parent=1 // pred_fallthru
      _
    %v16 = vld [vmem:[%s0] sm:$0xff]
    %v17 = vld [vmem:[%s0 + $0x8] sm:$0xff]
    %v18 = vld [vmem:[%s0 + $0x10] sm:$0xff]
    %v19 = vld [vmem:[%s0 + $0x18] sm:$0xff]
    %v20 = vld [vmem:[%s0 + $0x20] sm:$0xff]
    %v21 = vld [vmem:[%s0 + $0x28] sm:$0xff]
    %v22 = vld [vmem:[%s0 + $0x30] sm:$0xff]
    %v23 = vld [vmem:[%s0 + $0x38] sm:$0xff]
    %v32 = vcombine.high %v16, %v16
    %v34 = vunpack.c.l.s4 1983009808
    %v35 = vunpack.c.0.s8 %v34
    %v36 = vlaneseq
    %v37 = vshrl.u32 %v36, 7
    %v38 = vsub.s32 %v35, %v37
    %v39 = vrot.slane %v16, %v38
    %v41 = vunpack.c.l.s4 1983009808
    %v42 = vunpack.c.0.s8 %v41
    %v43 = vlaneseq
    %v44 = vshrl.u32 %v43, 7
    %v45 = vsub.s32 %v42, %v44
    %v46 = vrot.slane %v32, %v45
    %v47 = vcombine.high %v39, %v39
    %v48 = vcombine.high %v46, %v46
    %v49 = vcombine.high %v17, %v17
    %v51 = vunpack.c.l.s4 1983009808
    %v52 = vunpack.c.0.s8 %v51
    %v53 = vlaneseq
    %v54 = vshrl.u32 %v53, 7
    %v55 = vsub.s32 %v52, %v54
    %v56 = vrot.slane %v17, %v55
    %v58 = vunpack.c.l.s4 1983009808
    %v59 = vunpack.c.0.s8 %v58
    %v60 = vlaneseq
    %v61 = vshrl.u32 %v60, 7
    %v62 = vsub.s32 %v59, %v61
    %v63 = vrot.slane %v49, %v62
    %v64 = vcombine.high %v56, %v56
    %v65 = vcombine.high %v63, %v63
    %v66 = vcombine.high %v18, %v18
    %v68 = vunpack.c.l.s4 1983009808
    %v69 = vunpack.c.0.s8 %v68
    %v70 = vlaneseq
    %v71 = vshrl.u32 %v70, 7
    %v72 = vsub.s32 %v69, %v71
    %v73 = vrot.slane %v18, %v72
    %v75 = vunpack.c.l.s4 1983009808
    %v76 = vunpack.c.0.s8 %v75
    %v77 = vlaneseq
    %v78 = vshrl.u32 %v77, 7
    %v79 = vsub.s32 %v76, %v78
    %v80 = vrot.slane %v66, %v79
    %v81 = vcombine.high %v73, %v73
    %v82 = vcombine.high %v80, %v80
    %v83 = vcombine.high %v19, %v19
    %v85 = vunpack.c.l.s4 1983009808
    %v86 = vunpack.c.0.s8 %v85
    %v87 = vlaneseq
    %v88 = vshrl.u32 %v87, 7
    %v89 = vsub.s32 %v86, %v88
    %v90 = vrot.slane %v19, %v89
    %v92 = vunpack.c.l.s4 1983009808
    %v93 = vunpack.c.0.s8 %v92
    %v94 = vlaneseq
    %v95 = vshrl.u32 %v94, 7
    %v96 = vsub.s32 %v93, %v95
    %v97 = vrot.slane %v83, %v96
    %v98 = vcombine.high %v90, %v90
    %v99 = vcombine.high %v97, %v97
    %v100 = vcombine.high %v20, %v20
    %v102 = vunpack.c.l.s4 1983009808
    %v103 = vunpack.c.0.s8 %v102
    %v104 = vlaneseq
    %v105 = vshrl.u32 %v104, 7
    %v106 = vsub.s32 %v103, %v105
    %v107 = vrot.slane %v20, %v106
    %v109 = vunpack.c.l.s4 1983009808
    %v110 = vunpack.c.0.s8 %v109
    %v111 = vlaneseq
    %v112 = vshrl.u32 %v111, 7
    %v113 = vsub.s32 %v110, %v112
    %v114 = vrot.slane %v100, %v113
    %v115 = vcombine.high %v107, %v107
    %v116 = vcombine.high %v114, %v114
    %v117 = vcombine.high %v21, %v21
    %v119 = vunpack.c.l.s4 1983009808
    %v120 = vunpack.c.0.s8 %v119
    %v121 = vlaneseq
    %v122 = vshrl.u32 %v121, 7
    %v123 = vsub.s32 %v120, %v122
    %v124 = vrot.slane %v21, %v123
    %v126 = vunpack.c.l.s4 1983009808
    %v127 = vunpack.c.0.s8 %v126
    %v128 = vlaneseq
    %v129 = vshrl.u32 %v128, 7
    %v130 = vsub.s32 %v127, %v129
    %v131 = vrot.slane %v117, %v130
    %v132 = vcombine.high %v124, %v124
    %v133 = vcombine.high %v131, %v131
    %v134 = vcombine.high %v22, %v22
    %v136 = vunpack.c.l.s4 1983009808
    %v137 = vunpack.c.0.s8 %v136
    %v138 = vlaneseq
    %v139 = vshrl.u32 %v138, 7
    %v140 = vsub.s32 %v137, %v139
    %v141 = vrot.slane %v22, %v140
    %v143 = vunpack.c.l.s4 1983009808
    %v144 = vunpack.c.0.s8 %v143
    %v145 = vlaneseq
    %v146 = vshrl.u32 %v145, 7
    %v147 = vsub.s32 %v144, %v146
    %v148 = vrot.slane %v134, %v147
    %v149 = vcombine.high %v141, %v141
    %v150 = vcombine.high %v148, %v148
    %v151 = vcombine.high %v23, %v23
    %v153 = vunpack.c.l.s4 1983009808
    %v154 = vunpack.c.0.s8 %v153
    %v155 = vlaneseq
    %v156 = vshrl.u32 %v155, 7
    %v157 = vsub.s32 %v154, %v156
    %v158 = vrot.slane %v23, %v157
    %v160 = vunpack.c.l.s4 1983009808
    %v161 = vunpack.c.0.s8 %v160
    %v162 = vlaneseq
    %v163 = vshrl.u32 %v162, 7
    %v164 = vsub.s32 %v161, %v163
    %v165 = vrot.slane %v151, %v164
    %v166 = vcombine.high %v158, %v158
    %v167 = vcombine.high %v165, %v165
    %v200 = vpack.c.bf16 %v39, %v39
    %v201 = vpack.c.bf16 %v47, %v47
    %v202 = vpack.c.bf16 %v46, %v46
    %v203 = vpack.c.bf16 %v48, %v48
    %v204 = vpack.c.bf16 %v56, %v56
    %v205 = vpack.c.bf16 %v64, %v64
    %v206 = vpack.c.bf16 %v63, %v63
    %v207 = vpack.c.bf16 %v65, %v65
    %v208 = vpack.c.bf16 %v73, %v73
    %v209 = vpack.c.bf16 %v81, %v81
    %v210 = vpack.c.bf16 %v80, %v80
    %v211 = vpack.c.bf16 %v82, %v82
    %v212 = vpack.c.bf16 %v90, %v90
    %v213 = vpack.c.bf16 %v98, %v98
    %v214 = vpack.c.bf16 %v97, %v97
    %v215 = vpack.c.bf16 %v99, %v99
    %v216 = vpack.c.bf16 %v107, %v107
    %v217 = vpack.c.bf16 %v115, %v115
    %v218 = vpack.c.bf16 %v114, %v114
    %v219 = vpack.c.bf16 %v116, %v116
    %v220 = vpack.c.bf16 %v124, %v124
    %v221 = vpack.c.bf16 %v132, %v132
    %v222 = vpack.c.bf16 %v131, %v131
    %v223 = vpack.c.bf16 %v133, %v133
    %v224 = vpack.c.bf16 %v141, %v141
    %v225 = vpack.c.bf16 %v149, %v149
    %v226 = vpack.c.bf16 %v148, %v148
    %v227 = vpack.c.bf16 %v150, %v150
    %v228 = vpack.c.bf16 %v158, %v158
    %v229 = vpack.c.bf16 %v166, %v166
    %v230 = vpack.c.bf16 %v165, %v165
    %v231 = vpack.c.bf16 %v167, %v167
    %v232 = vld [vmem:[%s1] sm:$0xff]
    %v233 = vld [vmem:[%s1 + $0x8] sm:$0xff]
    %v234 = vld [vmem:[%s1 + $0x10] sm:$0xff]
    %v235 = vld [vmem:[%s1 + $0x18] sm:$0xff]
    %v236 = vld [vmem:[%s1 + $0x20] sm:$0xff]
    %v237 = vld [vmem:[%s1 + $0x28] sm:$0xff]
    %v238 = vld [vmem:[%s1 + $0x30] sm:$0xff]
    %v239 = vld [vmem:[%s1 + $0x38] sm:$0xff]
    %v240 = vld [vmem:[%s1 + $0x40] sm:$0xff]
    %v241 = vld [vmem:[%s1 + $0x48] sm:$0xff]
    %v242 = vld [vmem:[%s1 + $0x50] sm:$0xff]
    %v243 = vld [vmem:[%s1 + $0x58] sm:$0xff]
    %v244 = vld [vmem:[%s1 + $0x60] sm:$0xff]
    %v245 = vld [vmem:[%s1 + $0x68] sm:$0xff]
    %v246 = vld [vmem:[%s1 + $0x70] sm:$0xff]
    %v247 = vld [vmem:[%s1 + $0x78] sm:$0xff]
    %v248 = vld [vmem:[%s1 + $0x80] sm:$0xff]
    %v249 = vld [vmem:[%s1 + $0x88] sm:$0xff]
    %v250 = vld [vmem:[%s1 + $0x90] sm:$0xff]
    %v251 = vld [vmem:[%s1 + $0x98] sm:$0xff]
    %v252 = vld [vmem:[%s1 + $0xa0] sm:$0xff]
    %v253 = vld [vmem:[%s1 + $0xa8] sm:$0xff]
    %v254 = vld [vmem:[%s1 + $0xb0] sm:$0xff]
    %v255 = vld [vmem:[%s1 + $0xb8] sm:$0xff]
    %v256 = vld [vmem:[%s1 + $0xc0] sm:$0xff]
    %v257 = vld [vmem:[%s1 + $0xc8] sm:$0xff]
    %v258 = vld [vmem:[%s1 + $0xd0] sm:$0xff]
    %v259 = vld [vmem:[%s1 + $0xd8] sm:$0xff]
    %v260 = vld [vmem:[%s1 + $0xe0] sm:$0xff]
    %v261 = vld [vmem:[%s1 + $0xe8] sm:$0xff]
    %v262 = vld [vmem:[%s1 + $0xf0] sm:$0xff]
    %v263 = vld [vmem:[%s1 + $0xf8] sm:$0xff]
    %v264 = vld [vmem:[%s1 + $0x100] sm:$0x3]
    %v265 = vld [vmem:[%s1 + $0x108] sm:$0x3]
    %v266 = vld [vmem:[%s1 + $0x110] sm:$0x3]
    %v267 = vld [vmem:[%s1 + $0x118] sm:$0x3]
    %v268 = vld [vmem:[%s1 + $0x120] sm:$0x3]
    %v269 = vld [vmem:[%s1 + $0x128] sm:$0x3]
    %v270 = vld [vmem:[%s1 + $0x130] sm:$0x3]
    %v271 = vld [vmem:[%s1 + $0x138] sm:$0x3]
    %v272 = vld [vmem:[%s1 + $0x140] sm:$0x3]
    %v273 = vld [vmem:[%s1 + $0x148] sm:$0x3]
    %v274 = vld [vmem:[%s1 + $0x150] sm:$0x3]
    %v275 = vld [vmem:[%s1 + $0x158] sm:$0x3]
    %v276 = vld [vmem:[%s1 + $0x160] sm:$0x3]
    %v277 = vld [vmem:[%s1 + $0x168] sm:$0x3]
    %v278 = vld [vmem:[%s1 + $0x170] sm:$0x3]
    %v279 = vld [vmem:[%s1 + $0x178] sm:$0x3]
    %v280 = vld [vmem:[%s1 + $0x180] sm:$0x3]
    %v281 = vld [vmem:[%s1 + $0x188] sm:$0x3]
    %v282 = vld [vmem:[%s1 + $0x190] sm:$0x3]
    %v283 = vld [vmem:[%s1 + $0x198] sm:$0x3]
    %v284 = vld [vmem:[%s1 + $0x1a0] sm:$0x3]
    %v285 = vld [vmem:[%s1 + $0x1a8] sm:$0x3]
    %v286 = vld [vmem:[%s1 + $0x1b0] sm:$0x3]
    %v287 = vld [vmem:[%s1 + $0x1b8] sm:$0x3]
    %v288 = vld [vmem:[%s1 + $0x1c0] sm:$0x3]
    %v289 = vld [vmem:[%s1 + $0x1c8] sm:$0x3]
    %v290 = vld [vmem:[%s1 + $0x1d0] sm:$0x3]
    %v291 = vld [vmem:[%s1 + $0x1d8] sm:$0x3]
    %v292 = vld [vmem:[%s1 + $0x1e0] sm:$0x3]
    %v293 = vld [vmem:[%s1 + $0x1e8] sm:$0x3]
    %v294 = vld [vmem:[%s1 + $0x1f0] sm:$0x3]
    %v295 = vld [vmem:[%s1 + $0x1f8] sm:$0x3]
    %v296 = vpack.c.bf16 %v264, %v232
    %v297 = vpack.c.bf16 %v265, %v233
    %v298 = vpack.c.bf16 %v266, %v234
    %v299 = vpack.c.bf16 %v267, %v235
    %v300 = vpack.c.bf16 %v268, %v236
    %v301 = vpack.c.bf16 %v269, %v237
    %v302 = vpack.c.bf16 %v270, %v238
    %v303 = vpack.c.bf16 %v271, %v239
    %v304 = vpack.c.bf16 %v272, %v240
    %v305 = vpack.c.bf16 %v273, %v241
    %v306 = vpack.c.bf16 %v274, %v242
    %v307 = vpack.c.bf16 %v275, %v243
    %v308 = vpack.c.bf16 %v276, %v244
    %v309 = vpack.c.bf16 %v277, %v245
    %v310 = vpack.c.bf16 %v278, %v246
    %v311 = vpack.c.bf16 %v279, %v247
    %v312 = vpack.c.bf16 %v280, %v248
    %v313 = vpack.c.bf16 %v281, %v249
    %v314 = vpack.c.bf16 %v282, %v250
    %v315 = vpack.c.bf16 %v283, %v251
    %v316 = vpack.c.bf16 %v284, %v252
    %v317 = vpack.c.bf16 %v285, %v253
    %v318 = vpack.c.bf16 %v286, %v254
    %v319 = vpack.c.bf16 %v287, %v255
    %v320 = vpack.c.bf16 %v288, %v256
    %v321 = vpack.c.bf16 %v289, %v257
    %v322 = vpack.c.bf16 %v290, %v258
    %v323 = vpack.c.bf16 %v291, %v259
    %v324 = vpack.c.bf16 %v292, %v260
    %v325 = vpack.c.bf16 %v293, %v261
    %v326 = vpack.c.bf16 %v294, %v262
    %v327 = vpack.c.bf16 %v295, %v263
    %v328 = vld [vmem:[%s2] sm:$0x1]
    %v330 = vlaneseq
    %v331 = vshrl.u32 %v330, 7
    %v332 = vsub.s32 0, %v331
    %v333 = vrot.slane %v328, %v332
    %335 = vmatprep.subr.bf16.mxu0 0
    %336 = vmatpush1.bf16.xpose.msra.mxu0 0
    %337 = vmatprep.subr.bf16.mxu0 0
    %338 = vmatpush1.bf16.xpose.msra.mxu0 0
    %339 = vmatprep.subr.bf16.mxu0 0
    %340 = vmatpush1.bf16.xpose.msra.mxu0 0
    %341 = vmatprep.subr.bf16.mxu0 0
    %342 = vmatpush1.bf16.xpose.msra.mxu0 0
    %343 = vmatprep.subr.bf16.mxu0 0
    %344 = vmatpush1.bf16.xpose.msra.mxu0 0
    %345 = vmatprep.subr.bf16.mxu0 0
    %346 = vmatpush1.bf16.xpose.msra.mxu0 0
    %347 = vmatprep.subr.bf16.mxu0 0
    %348 = vmatpush1.bf16.xpose.msra.mxu0 0
    %349 = vmatprep.subr.bf16.mxu0 %v297
    %350 = vmatpush1.bf16.xpose.msra.mxu0 %v296
    %351 = vmatprep.subr.bf16.mxu0 0
    %352 = vmatpush2.bf16.xpose.msra.mxu0 0
    %353 = vmatprep.subr.bf16.mxu0 0
    %354 = vmatpush2.bf16.xpose.msra.mxu0 0
    %355 = vmatprep.subr.bf16.mxu0 0
    %356 = vmatpush2.bf16.xpose.msra.mxu0 0
    %357 = vmatprep.subr.bf16.mxu0 0
    %358 = vmatpush2.bf16.xpose.msra.mxu0 0
    %359 = vmatprep.subr.bf16.mxu0 0
    %360 = vmatpush2.bf16.xpose.msra.mxu0 0
    %361 = vmatprep.subr.bf16.mxu0 0
    %362 = vmatpush2.bf16.xpose.msra.mxu0 0
    %363 = vmatprep.subr.bf16.mxu0 0
    %364 = vmatpush2.bf16.xpose.msra.mxu0 0
    %365 = vmatprep.subr.bf16.mxu0 0
    %366 = vmatpush2.bf16.xpose.msra.mxu0 0
    %367 = vmatprep.mubr.bf16.mxu0 %v201
    %368 = vmatmul.mubr.bf16.gmra.mxu0 %v200
    %v369 = vpop.f32.mrf.mxu0
    %v370 = vadd.f32 %v333, %v369
    %v371 = vpop.f32.mrf.mxu0
    %v372 = vpop.f32.mrf.mxu0
    %v373 = vpop.f32.mrf.mxu0
    %374 = vdwg.mxu0
    %375 = vmatprep.subr.bf16.mxu0 0
    %376 = vmatpush1.bf16.xpose.msra.mxu0 0
    %377 = vmatprep.subr.bf16.mxu0 0
    %378 = vmatpush1.bf16.xpose.msra.mxu0 0
    %379 = vmatprep.subr.bf16.mxu0 0
    %380 = vmatpush1.bf16.xpose.msra.mxu0 0
    %381 = vmatprep.subr.bf16.mxu0 0
    %382 = vmatpush1.bf16.xpose.msra.mxu0 0
    %383 = vmatprep.subr.bf16.mxu0 0
    %384 = vmatpush1.bf16.xpose.msra.mxu0 0
    %385 = vmatprep.subr.bf16.mxu0 0
    %386 = vmatpush1.bf16.xpose.msra.mxu0 0
    %387 = vmatprep.subr.bf16.mxu0 0
    %388 = vmatpush1.bf16.xpose.msra.mxu0 0
    %389 = vmatprep.subr.bf16.mxu0 %v299
    %390 = vmatpush1.bf16.xpose.msra.mxu0 %v298
    %391 = vmatprep.subr.bf16.mxu0 0
    %392 = vmatpush2.bf16.xpose.msra.mxu0 0
    %393 = vmatprep.subr.bf16.mxu0 0
    %394 = vmatpush2.bf16.xpose.msra.mxu0 0
    %395 = vmatprep.subr.bf16.mxu0 0
    %396 = vmatpush2.bf16.xpose.msra.mxu0 0
    %397 = vmatprep.subr.bf16.mxu0 0
    %398 = vmatpush2.bf16.xpose.msra.mxu0 0
    %399 = vmatprep.subr.bf16.mxu0 0
    %400 = vmatpush2.bf16.xpose.msra.mxu0 0
    %401 = vmatprep.subr.bf16.mxu0 0
    %402 = vmatpush2.bf16.xpose.msra.mxu0 0
    %403 = vmatprep.subr.bf16.mxu0 0
    %404 = vmatpush2.bf16.xpose.msra.mxu0 0
    %405 = vmatprep.subr.bf16.mxu0 0
    %406 = vmatpush2.bf16.xpose.msra.mxu0 0
    %407 = vmatprep.mubr.bf16.mxu0 %v203
    %408 = vmatmul.mubr.bf16.gmra.mxu0 %v202
    %v409 = vpop.f32.mrf.mxu0
    %v410 = vadd.f32 %v370, %v409
    %v411 = vpop.f32.mrf.mxu0
    %v412 = vpop.f32.mrf.mxu0
    %v413 = vpop.f32.mrf.mxu0
    %414 = vdwg.mxu0
    %415 = vmatprep.subr.bf16.mxu0 0
    %416 = vmatpush1.bf16.xpose.msra.mxu0 0
    %417 = vmatprep.subr.bf16.mxu0 0
    %418 = vmatpush1.bf16.xpose.msra.mxu0 0
    %419 = vmatprep.subr.bf16.mxu0 0
    %420 = vmatpush1.bf16.xpose.msra.mxu0 0
    %421 = vmatprep.subr.bf16.mxu0 0
    %422 = vmatpush1.bf16.xpose.msra.mxu0 0
    %423 = vmatprep.subr.bf16.mxu0 0
    %424 = vmatpush1.bf16.xpose.msra.mxu0 0
    %425 = vmatprep.subr.bf16.mxu0 0
    %426 = vmatpush1.bf16.xpose.msra.mxu0 0
    %427 = vmatprep.subr.bf16.mxu0 0
    %428 = vmatpush1.bf16.xpose.msra.mxu0 0
    %429 = vmatprep.subr.bf16.mxu0 %v301
    %430 = vmatpush1.bf16.xpose.msra.mxu0 %v300
    %431 = vmatprep.subr.bf16.mxu0 0
    %432 = vmatpush2.bf16.xpose.msra.mxu0 0
    %433 = vmatprep.subr.bf16.mxu0 0
    %434 = vmatpush2.bf16.xpose.msra.mxu0 0
    %435 = vmatprep.subr.bf16.mxu0 0
    %436 = vmatpush2.bf16.xpose.msra.mxu0 0
    %437 = vmatprep.subr.bf16.mxu0 0
    %438 = vmatpush2.bf16.xpose.msra.mxu0 0
    %439 = vmatprep.subr.bf16.mxu0 0
    %440 = vmatpush2.bf16.xpose.msra.mxu0 0
    %441 = vmatprep.subr.bf16.mxu0 0
    %442 = vmatpush2.bf16.xpose.msra.mxu0 0
    %443 = vmatprep.subr.bf16.mxu0 0
    %444 = vmatpush2.bf16.xpose.msra.mxu0 0
    %445 = vmatprep.subr.bf16.mxu0 0
    %446 = vmatpush2.bf16.xpose.msra.mxu0 0
    %447 = vmatprep.mubr.bf16.mxu0 %v205
    %448 = vmatmul.mubr.bf16.gmra.mxu0 %v204
    %v449 = vpop.f32.mrf.mxu0
    %v450 = vadd.f32 %v410, %v449
    %v451 = vpop.f32.mrf.mxu0
    %v452 = vpop.f32.mrf.mxu0
    %v453 = vpop.f32.mrf.mxu0
    %454 = vdwg.mxu0
    %455 = vmatprep.subr.bf16.mxu0 0
    %456 = vmatpush1.bf16.xpose.msra.mxu0 0
    %457 = vmatprep.subr.bf16.mxu0 0
    %458 = vmatpush1.bf16.xpose.msra.mxu0 0
    %459 = vmatprep.subr.bf16.mxu0 0
    %460 = vmatpush1.bf16.xpose.msra.mxu0 0
    %461 = vmatprep.subr.bf16.mxu0 0
    %462 = vmatpush1.bf16.xpose.msra.mxu0 0
    %463 = vmatprep.subr.bf16.mxu0 0
    %464 = vmatpush1.bf16.xpose.msra.mxu0 0
    %465 = vmatprep.subr.bf16.mxu0 0
    %466 = vmatpush1.bf16.xpose.msra.mxu0 0
    %467 = vmatprep.subr.bf16.mxu0 0
    %468 = vmatpush1.bf16.xpose.msra.mxu0 0
    %469 = vmatprep.subr.bf16.mxu0 %v303
    %470 = vmatpush1.bf16.xpose.msra.mxu0 %v302
    %471 = vmatprep.subr.bf16.mxu0 0
    %472 = vmatpush2.bf16.xpose.msra.mxu0 0
    %473 = vmatprep.subr.bf16.mxu0 0
    %474 = vmatpush2.bf16.xpose.msra.mxu0 0
    %475 = vmatprep.subr.bf16.mxu0 0
    %476 = vmatpush2.bf16.xpose.msra.mxu0 0
    %477 = vmatprep.subr.bf16.mxu0 0
    %478 = vmatpush2.bf16.xpose.msra.mxu0 0
    %479 = vmatprep.subr.bf16.mxu0 0
    %480 = vmatpush2.bf16.xpose.msra.mxu0 0
    %481 = vmatprep.subr.bf16.mxu0 0
    %482 = vmatpush2.bf16.xpose.msra.mxu0 0
    %483 = vmatprep.subr.bf16.mxu0 0
    %484 = vmatpush2.bf16.xpose.msra.mxu0 0
    %485 = vmatprep.subr.bf16.mxu0 0
    %486 = vmatpush2.bf16.xpose.msra.mxu0 0
    %487 = vmatprep.mubr.bf16.mxu0 %v207
    %488 = vmatmul.mubr.bf16.gmra.mxu0 %v206
    %v489 = vpop.f32.mrf.mxu0
    %v490 = vadd.f32 %v450, %v489
    %v491 = vpop.f32.mrf.mxu0
    %v492 = vpop.f32.mrf.mxu0
    %v493 = vpop.f32.mrf.mxu0
    %494 = vdwg.mxu0
    %495 = vmatprep.subr.bf16.mxu0 0
    %496 = vmatpush1.bf16.xpose.msra.mxu0 0
    %497 = vmatprep.subr.bf16.mxu0 0
    %498 = vmatpush1.bf16.xpose.msra.mxu0 0
    %499 = vmatprep.subr.bf16.mxu0 0
    %500 = vmatpush1.bf16.xpose.msra.mxu0 0
    %501 = vmatprep.subr.bf16.mxu0 0
    %502 = vmatpush1.bf16.xpose.msra.mxu0 0
    %503 = vmatprep.subr.bf16.mxu0 0
    %504 = vmatpush1.bf16.xpose.msra.mxu0 0
    %505 = vmatprep.subr.bf16.mxu0 0
    %506 = vmatpush1.bf16.xpose.msra.mxu0 0
    %507 = vmatprep.subr.bf16.mxu0 0
    %508 = vmatpush1.bf16.xpose.msra.mxu0 0
    %509 = vmatprep.subr.bf16.mxu0 %v305
    %510 = vmatpush1.bf16.xpose.msra.mxu0 %v304
    %511 = vmatprep.subr.bf16.mxu0 0
    %512 = vmatpush2.bf16.xpose.msra.mxu0 0
    %513 = vmatprep.subr.bf16.mxu0 0
    %514 = vmatpush2.bf16.xpose.msra.mxu0 0
    %515 = vmatprep.subr.bf16.mxu0 0
    %516 = vmatpush2.bf16.xpose.msra.mxu0 0
    %517 = vmatprep.subr.bf16.mxu0 0
    %518 = vmatpush2.bf16.xpose.msra.mxu0 0
    %519 = vmatprep.subr.bf16.mxu0 0
    %520 = vmatpush2.bf16.xpose.msra.mxu0 0
    %521 = vmatprep.subr.bf16.mxu0 0
    %522 = vmatpush2.bf16.xpose.msra.mxu0 0
    %523 = vmatprep.subr.bf16.mxu0 0
    %524 = vmatpush2.bf16.xpose.msra.mxu0 0
    %525 = vmatprep.subr.bf16.mxu0 0
    %526 = vmatpush2.bf16.xpose.msra.mxu0 0
    %527 = vmatprep.mubr.bf16.mxu0 %v209
    %528 = vmatmul.mubr.bf16.gmra.mxu0 %v208
    %v529 = vpop.f32.mrf.mxu0
    %v530 = vadd.f32 %v490, %v529
    %v531 = vpop.f32.mrf.mxu0
    %v532 = vpop.f32.mrf.mxu0
    %v533 = vpop.f32.mrf.mxu0
    %534 = vdwg.mxu0
    %535 = vmatprep.subr.bf16.mxu0 0
    %536 = vmatpush1.bf16.xpose.msra.mxu0 0
    %537 = vmatprep.subr.bf16.mxu0 0
    %538 = vmatpush1.bf16.xpose.msra.mxu0 0
    %539 = vmatprep.subr.bf16.mxu0 0
    %540 = vmatpush1.bf16.xpose.msra.mxu0 0
    %541 = vmatprep.subr.bf16.mxu0 0
    %542 = vmatpush1.bf16.xpose.msra.mxu0 0
    %543 = vmatprep.subr.bf16.mxu0 0
    %544 = vmatpush1.bf16.xpose.msra.mxu0 0
    %545 = vmatprep.subr.bf16.mxu0 0
    %546 = vmatpush1.bf16.xpose.msra.mxu0 0
    %547 = vmatprep.subr.bf16.mxu0 0
    %548 = vmatpush1.bf16.xpose.msra.mxu0 0
    %549 = vmatprep.subr.bf16.mxu0 %v307
    %550 = vmatpush1.bf16.xpose.msra.mxu0 %v306
    %551 = vmatprep.subr.bf16.mxu0 0
    %552 = vmatpush2.bf16.xpose.msra.mxu0 0
    %553 = vmatprep.subr.bf16.mxu0 0
    %554 = vmatpush2.bf16.xpose.msra.mxu0 0
    %555 = vmatprep.subr.bf16.mxu0 0
    %556 = vmatpush2.bf16.xpose.msra.mxu0 0
    %557 = vmatprep.subr.bf16.mxu0 0
    %558 = vmatpush2.bf16.xpose.msra.mxu0 0
    %559 = vmatprep.subr.bf16.mxu0 0
    %560 = vmatpush2.bf16.xpose.msra.mxu0 0
    %561 = vmatprep.subr.bf16.mxu0 0
    %562 = vmatpush2.bf16.xpose.msra.mxu0 0
    %563 = vmatprep.subr.bf16.mxu0 0
    %564 = vmatpush2.bf16.xpose.msra.mxu0 0
    %565 = vmatprep.subr.bf16.mxu0 0
    %566 = vmatpush2.bf16.xpose.msra.mxu0 0
    %567 = vmatprep.mubr.bf16.mxu0 %v211
    %568 = vmatmul.mubr.bf16.gmra.mxu0 %v210
    %v569 = vpop.f32.mrf.mxu0
    %v570 = vadd.f32 %v530, %v569
    %v571 = vpop.f32.mrf.mxu0
    %v572 = vpop.f32.mrf.mxu0
    %v573 = vpop.f32.mrf.mxu0
    %574 = vdwg.mxu0
    %575 = vmatprep.subr.bf16.mxu0 0
    %576 = vmatpush1.bf16.xpose.msra.mxu0 0
    %577 = vmatprep.subr.bf16.mxu0 0
    %578 = vmatpush1.bf16.xpose.msra.mxu0 0
    %579 = vmatprep.subr.bf16.mxu0 0
    %580 = vmatpush1.bf16.xpose.msra.mxu0 0
    %581 = vmatprep.subr.bf16.mxu0 0
    %582 = vmatpush1.bf16.xpose.msra.mxu0 0
    %583 = vmatprep.subr.bf16.mxu0 0
    %584 = vmatpush1.bf16.xpose.msra.mxu0 0
    %585 = vmatprep.subr.bf16.mxu0 0
    %586 = vmatpush1.bf16.xpose.msra.mxu0 0
    %587 = vmatprep.subr.bf16.mxu0 0
    %588 = vmatpush1.bf16.xpose.msra.mxu0 0
    %589 = vmatprep.subr.bf16.mxu0 %v309
    %590 = vmatpush1.bf16.xpose.msra.mxu0 %v308
    %591 = vmatprep.subr.bf16.mxu0 0
    %592 = vmatpush2.bf16.xpose.msra.mxu0 0
    %593 = vmatprep.subr.bf16.mxu0 0
    %594 = vmatpush2.bf16.xpose.msra.mxu0 0
    %595 = vmatprep.subr.bf16.mxu0 0
    %596 = vmatpush2.bf16.xpose.msra.mxu0 0
    %597 = vmatprep.subr.bf16.mxu0 0
    %598 = vmatpush2.bf16.xpose.msra.mxu0 0
    %599 = vmatprep.subr.bf16.mxu0 0
    %600 = vmatpush2.bf16.xpose.msra.mxu0 0
    %601 = vmatprep.subr.bf16.mxu0 0
    %602 = vmatpush2.bf16.xpose.msra.mxu0 0
    %603 = vmatprep.subr.bf16.mxu0 0
    %604 = vmatpush2.bf16.xpose.msra.mxu0 0
    %605 = vmatprep.subr.bf16.mxu0 0
    %606 = vmatpush2.bf16.xpose.msra.mxu0 0
    %607 = vmatprep.mubr.bf16.mxu0 %v213
    %608 = vmatmul.mubr.bf16.gmra.mxu0 %v212
    %v609 = vpop.f32.mrf.mxu0
    %v610 = vadd.f32 %v570, %v609
    %v611 = vpop.f32.mrf.mxu0
    %v612 = vpop.f32.mrf.mxu0
    %v613 = vpop.f32.mrf.mxu0
    %614 = vdwg.mxu0
    %615 = vmatprep.subr.bf16.mxu0 0
    %616 = vmatpush1.bf16.xpose.msra.mxu0 0
    %617 = vmatprep.subr.bf16.mxu0 0
    %618 = vmatpush1.bf16.xpose.msra.mxu0 0
    %619 = vmatprep.subr.bf16.mxu0 0
    %620 = vmatpush1.bf16.xpose.msra.mxu0 0
    %621 = vmatprep.subr.bf16.mxu0 0
    %622 = vmatpush1.bf16.xpose.msra.mxu0 0
    %623 = vmatprep.subr.bf16.mxu0 0
    %624 = vmatpush1.bf16.xpose.msra.mxu0 0
    %625 = vmatprep.subr.bf16.mxu0 0
    %626 = vmatpush1.bf16.xpose.msra.mxu0 0
    %627 = vmatprep.subr.bf16.mxu0 0
    %628 = vmatpush1.bf16.xpose.msra.mxu0 0
    %629 = vmatprep.subr.bf16.mxu0 %v311
    %630 = vmatpush1.bf16.xpose.msra.mxu0 %v310
    %631 = vmatprep.subr.bf16.mxu0 0
    %632 = vmatpush2.bf16.xpose.msra.mxu0 0
    %633 = vmatprep.subr.bf16.mxu0 0
    %634 = vmatpush2.bf16.xpose.msra.mxu0 0
    %635 = vmatprep.subr.bf16.mxu0 0
    %636 = vmatpush2.bf16.xpose.msra.mxu0 0
    %637 = vmatprep.subr.bf16.mxu0 0
    %638 = vmatpush2.bf16.xpose.msra.mxu0 0
    %639 = vmatprep.subr.bf16.mxu0 0
    %640 = vmatpush2.bf16.xpose.msra.mxu0 0
    %641 = vmatprep.subr.bf16.mxu0 0
    %642 = vmatpush2.bf16.xpose.msra.mxu0 0
    %643 = vmatprep.subr.bf16.mxu0 0
    %644 = vmatpush2.bf16.xpose.msra.mxu0 0
    %645 = vmatprep.subr.bf16.mxu0 0
    %646 = vmatpush2.bf16.xpose.msra.mxu0 0
    %647 = vmatprep.mubr.bf16.mxu0 %v215
    %648 = vmatmul.mubr.bf16.gmra.mxu0 %v214
    %v649 = vpop.f32.mrf.mxu0
    %v650 = vadd.f32 %v610, %v649
    %v651 = vpop.f32.mrf.mxu0
    %v652 = vpop.f32.mrf.mxu0
    %v653 = vpop.f32.mrf.mxu0
    %654 = vdwg.mxu0
    %655 = vmatprep.subr.bf16.mxu0 0
    %656 = vmatpush1.bf16.xpose.msra.mxu0 0
    %657 = vmatprep.subr.bf16.mxu0 0
    %658 = vmatpush1.bf16.xpose.msra.mxu0 0
    %659 = vmatprep.subr.bf16.mxu0 0
    %660 = vmatpush1.bf16.xpose.msra.mxu0 0
    %661 = vmatprep.subr.bf16.mxu0 0
    %662 = vmatpush1.bf16.xpose.msra.mxu0 0
    %663 = vmatprep.subr.bf16.mxu0 0
    %664 = vmatpush1.bf16.xpose.msra.mxu0 0
    %665 = vmatprep.subr.bf16.mxu0 0
    %666 = vmatpush1.bf16.xpose.msra.mxu0 0
    %667 = vmatprep.subr.bf16.mxu0 0
    %668 = vmatpush1.bf16.xpose.msra.mxu0 0
    %669 = vmatprep.subr.bf16.mxu0 %v313
    %670 = vmatpush1.bf16.xpose.msra.mxu0 %v312
    %671 = vmatprep.subr.bf16.mxu0 0
    %672 = vmatpush2.bf16.xpose.msra.mxu0 0
    %673 = vmatprep.subr.bf16.mxu0 0
    %674 = vmatpush2.bf16.xpose.msra.mxu0 0
    %675 = vmatprep.subr.bf16.mxu0 0
    %676 = vmatpush2.bf16.xpose.msra.mxu0 0
    %677 = vmatprep.subr.bf16.mxu0 0
    %678 = vmatpush2.bf16.xpose.msra.mxu0 0
    %679 = vmatprep.subr.bf16.mxu0 0
    %680 = vmatpush2.bf16.xpose.msra.mxu0 0
    %681 = vmatprep.subr.bf16.mxu0 0
    %682 = vmatpush2.bf16.xpose.msra.mxu0 0
    %683 = vmatprep.subr.bf16.mxu0 0
    %684 = vmatpush2.bf16.xpose.msra.mxu0 0
    %685 = vmatprep.subr.bf16.mxu0 0
    %686 = vmatpush2.bf16.xpose.msra.mxu0 0
    %687 = vmatprep.mubr.bf16.mxu0 %v217
    %688 = vmatmul.mubr.bf16.gmra.mxu0 %v216
    %v689 = vpop.f32.mrf.mxu0
    %v690 = vadd.f32 %v650, %v689
    %v691 = vpop.f32.mrf.mxu0
    %v692 = vpop.f32.mrf.mxu0
    %v693 = vpop.f32.mrf.mxu0
    %694 = vdwg.mxu0
    %695 = vmatprep.subr.bf16.mxu0 0
    %696 = vmatpush1.bf16.xpose.msra.mxu0 0
    %697 = vmatprep.subr.bf16.mxu0 0
    %698 = vmatpush1.bf16.xpose.msra.mxu0 0
    %699 = vmatprep.subr.bf16.mxu0 0
    %700 = vmatpush1.bf16.xpose.msra.mxu0 0
    %701 = vmatprep.subr.bf16.mxu0 0
    %702 = vmatpush1.bf16.xpose.msra.mxu0 0
    %703 = vmatprep.subr.bf16.mxu0 0
    %704 = vmatpush1.bf16.xpose.msra.mxu0 0
    %705 = vmatprep.subr.bf16.mxu0 0
    %706 = vmatpush1.bf16.xpose.msra.mxu0 0
    %707 = vmatprep.subr.bf16.mxu0 0
    %708 = vmatpush1.bf16.xpose.msra.mxu0 0
    %709 = vmatprep.subr.bf16.mxu0 %v315
    %710 = vmatpush1.bf16.xpose.msra.mxu0 %v314
    %711 = vmatprep.subr.bf16.mxu0 0
    %712 = vmatpush2.bf16.xpose.msra.mxu0 0
    %713 = vmatprep.subr.bf16.mxu0 0
    %714 = vmatpush2.bf16.xpose.msra.mxu0 0
    %715 = vmatprep.subr.bf16.mxu0 0
    %716 = vmatpush2.bf16.xpose.msra.mxu0 0
    %717 = vmatprep.subr.bf16.mxu0 0
    %718 = vmatpush2.bf16.xpose.msra.mxu0 0
    %719 = vmatprep.subr.bf16.mxu0 0
    %720 = vmatpush2.bf16.xpose.msra.mxu0 0
    %721 = vmatprep.subr.bf16.mxu0 0
    %722 = vmatpush2.bf16.xpose.msra.mxu0 0
    %723 = vmatprep.subr.bf16.mxu0 0
    %724 = vmatpush2.bf16.xpose.msra.mxu0 0
    %725 = vmatprep.subr.bf16.mxu0 0
    %726 = vmatpush2.bf16.xpose.msra.mxu0 0
    %727 = vmatprep.mubr.bf16.mxu0 %v219
    %728 = vmatmul.mubr.bf16.gmra.mxu0 %v218
    %v729 = vpop.f32.mrf.mxu0
    %v730 = vadd.f32 %v690, %v729
    %v731 = vpop.f32.mrf.mxu0
    %v732 = vpop.f32.mrf.mxu0
    %v733 = vpop.f32.mrf.mxu0
    %734 = vdwg.mxu0
    %735 = vmatprep.subr.bf16.mxu0 0
    %736 = vmatpush1.bf16.xpose.msra.mxu0 0
    %737 = vmatprep.subr.bf16.mxu0 0
    %738 = vmatpush1.bf16.xpose.msra.mxu0 0
    %739 = vmatprep.subr.bf16.mxu0 0
    %740 = vmatpush1.bf16.xpose.msra.mxu0 0
    %741 = vmatprep.subr.bf16.mxu0 0
    %742 = vmatpush1.bf16.xpose.msra.mxu0 0
    %743 = vmatprep.subr.bf16.mxu0 0
    %744 = vmatpush1.bf16.xpose.msra.mxu0 0
    %745 = vmatprep.subr.bf16.mxu0 0
    %746 = vmatpush1.bf16.xpose.msra.mxu0 0
    %747 = vmatprep.subr.bf16.mxu0 0
    %748 = vmatpush1.bf16.xpose.msra.mxu0 0
    %749 = vmatprep.subr.bf16.mxu0 %v317
    %750 = vmatpush1.bf16.xpose.msra.mxu0 %v316
    %751 = vmatprep.subr.bf16.mxu0 0
    %752 = vmatpush2.bf16.xpose.msra.mxu0 0
    %753 = vmatprep.subr.bf16.mxu0 0
    %754 = vmatpush2.bf16.xpose.msra.mxu0 0
    %755 = vmatprep.subr.bf16.mxu0 0
    %756 = vmatpush2.bf16.xpose.msra.mxu0 0
    %757 = vmatprep.subr.bf16.mxu0 0
    %758 = vmatpush2.bf16.xpose.msra.mxu0 0
    %759 = vmatprep.subr.bf16.mxu0 0
    %760 = vmatpush2.bf16.xpose.msra.mxu0 0
    %761 = vmatprep.subr.bf16.mxu0 0
    %762 = vmatpush2.bf16.xpose.msra.mxu0 0
    %763 = vmatprep.subr.bf16.mxu0 0
    %764 = vmatpush2.bf16.xpose.msra.mxu0 0
    %765 = vmatprep.subr.bf16.mxu0 0
    %766 = vmatpush2.bf16.xpose.msra.mxu0 0
    %767 = vmatprep.mubr.bf16.mxu0 %v221
    %768 = vmatmul.mubr.bf16.gmra.mxu0 %v220
    %v769 = vpop.f32.mrf.mxu0
    %v770 = vadd.f32 %v730, %v769
    %v771 = vpop.f32.mrf.mxu0
    %v772 = vpop.f32.mrf.mxu0
    %v773 = vpop.f32.mrf.mxu0
    %774 = vdwg.mxu0
    %775 = vmatprep.subr.bf16.mxu0 0
    %776 = vmatpush1.bf16.xpose.msra.mxu0 0
    %777 = vmatprep.subr.bf16.mxu0 0
    %778 = vmatpush1.bf16.xpose.msra.mxu0 0
    %779 = vmatprep.subr.bf16.mxu0 0
    %780 = vmatpush1.bf16.xpose.msra.mxu0 0
    %781 = vmatprep.subr.bf16.mxu0 0
    %782 = vmatpush1.bf16.xpose.msra.mxu0 0
    %783 = vmatprep.subr.bf16.mxu0 0
    %784 = vmatpush1.bf16.xpose.msra.mxu0 0
    %785 = vmatprep.subr.bf16.mxu0 0
    %786 = vmatpush1.bf16.xpose.msra.mxu0 0
    %787 = vmatprep.subr.bf16.mxu0 0
    %788 = vmatpush1.bf16.xpose.msra.mxu0 0
    %789 = vmatprep.subr.bf16.mxu0 %v319
    %790 = vmatpush1.bf16.xpose.msra.mxu0 %v318
    %791 = vmatprep.subr.bf16.mxu0 0
    %792 = vmatpush2.bf16.xpose.msra.mxu0 0
    %793 = vmatprep.subr.bf16.mxu0 0
    %794 = vmatpush2.bf16.xpose.msra.mxu0 0
    %795 = vmatprep.subr.bf16.mxu0 0
    %796 = vmatpush2.bf16.xpose.msra.mxu0 0
    %797 = vmatprep.subr.bf16.mxu0 0
    %798 = vmatpush2.bf16.xpose.msra.mxu0 0
    %799 = vmatprep.subr.bf16.mxu0 0
    %800 = vmatpush2.bf16.xpose.msra.mxu0 0
    %801 = vmatprep.subr.bf16.mxu0 0
    %802 = vmatpush2.bf16.xpose.msra.mxu0 0
    %803 = vmatprep.subr.bf16.mxu0 0
    %804 = vmatpush2.bf16.xpose.msra.mxu0 0
    %805 = vmatprep.subr.bf16.mxu0 0
    %806 = vmatpush2.bf16.xpose.msra.mxu0 0
    %807 = vmatprep.mubr.bf16.mxu0 %v223
    %808 = vmatmul.mubr.bf16.gmra.mxu0 %v222
    %v809 = vpop.f32.mrf.mxu0
    %v810 = vadd.f32 %v770, %v809
    %v811 = vpop.f32.mrf.mxu0
    %v812 = vpop.f32.mrf.mxu0
    %v813 = vpop.f32.mrf.mxu0
    %814 = vdwg.mxu0
    %815 = vmatprep.subr.bf16.mxu0 0
    %816 = vmatpush1.bf16.xpose.msra.mxu0 0
    %817 = vmatprep.subr.bf16.mxu0 0
    %818 = vmatpush1.bf16.xpose.msra.mxu0 0
    %819 = vmatprep.subr.bf16.mxu0 0
    %820 = vmatpush1.bf16.xpose.msra.mxu0 0
    %821 = vmatprep.subr.bf16.mxu0 0
    %822 = vmatpush1.bf16.xpose.msra.mxu0 0
    %823 = vmatprep.subr.bf16.mxu0 0
    %824 = vmatpush1.bf16.xpose.msra.mxu0 0
    %825 = vmatprep.subr.bf16.mxu0 0
    %826 = vmatpush1.bf16.xpose.msra.mxu0 0
    %827 = vmatprep.subr.bf16.mxu0 0
    %828 = vmatpush1.bf16.xpose.msra.mxu0 0
    %829 = vmatprep.subr.bf16.mxu0 %v321
    %830 = vmatpush1.bf16.xpose.msra.mxu0 %v320
    %831 = vmatprep.subr.bf16.mxu0 0
    %832 = vmatpush2.bf16.xpose.msra.mxu0 0
    %833 = vmatprep.subr.bf16.mxu0 0
    %834 = vmatpush2.bf16.xpose.msra.mxu0 0
    %835 = vmatprep.subr.bf16.mxu0 0
    %836 = vmatpush2.bf16.xpose.msra.mxu0 0
    %837 = vmatprep.subr.bf16.mxu0 0
    %838 = vmatpush2.bf16.xpose.msra.mxu0 0
    %839 = vmatprep.subr.bf16.mxu0 0
    %840 = vmatpush2.bf16.xpose.msra.mxu0 0
    %841 = vmatprep.subr.bf16.mxu0 0
    %842 = vmatpush2.bf16.xpose.msra.mxu0 0
    %843 = vmatprep.subr.bf16.mxu0 0
    %844 = vmatpush2.bf16.xpose.msra.mxu0 0
    %845 = vmatprep.subr.bf16.mxu0 0
    %846 = vmatpush2.bf16.xpose.msra.mxu0 0
    %847 = vmatprep.mubr.bf16.mxu0 %v225
    %848 = vmatmul.mubr.bf16.gmra.mxu0 %v224
    %v849 = vpop.f32.mrf.mxu0
    %v850 = vadd.f32 %v810, %v849
    %v851 = vpop.f32.mrf.mxu0
    %v852 = vpop.f32.mrf.mxu0
    %v853 = vpop.f32.mrf.mxu0
    %854 = vdwg.mxu0
    %855 = vmatprep.subr.bf16.mxu0 0
    %856 = vmatpush1.bf16.xpose.msra.mxu0 0
    %857 = vmatprep.subr.bf16.mxu0 0
    %858 = vmatpush1.bf16.xpose.msra.mxu0 0
    %859 = vmatprep.subr.bf16.mxu0 0
    %860 = vmatpush1.bf16.xpose.msra.mxu0 0
    %861 = vmatprep.subr.bf16.mxu0 0
    %862 = vmatpush1.bf16.xpose.msra.mxu0 0
    %863 = vmatprep.subr.bf16.mxu0 0
    %864 = vmatpush1.bf16.xpose.msra.mxu0 0
    %865 = vmatprep.subr.bf16.mxu0 0
    %866 = vmatpush1.bf16.xpose.msra.mxu0 0
    %867 = vmatprep.subr.bf16.mxu0 0
    %868 = vmatpush1.bf16.xpose.msra.mxu0 0
    %869 = vmatprep.subr.bf16.mxu0 %v323
    %870 = vmatpush1.bf16.xpose.msra.mxu0 %v322
    %871 = vmatprep.subr.bf16.mxu0 0
    %872 = vmatpush2.bf16.xpose.msra.mxu0 0
    %873 = vmatprep.subr.bf16.mxu0 0
    %874 = vmatpush2.bf16.xpose.msra.mxu0 0
    %875 = vmatprep.subr.bf16.mxu0 0
    %876 = vmatpush2.bf16.xpose.msra.mxu0 0
    %877 = vmatprep.subr.bf16.mxu0 0
    %878 = vmatpush2.bf16.xpose.msra.mxu0 0
    %879 = vmatprep.subr.bf16.mxu0 0
    %880 = vmatpush2.bf16.xpose.msra.mxu0 0
    %881 = vmatprep.subr.bf16.mxu0 0
    %882 = vmatpush2.bf16.xpose.msra.mxu0 0
    %883 = vmatprep.subr.bf16.mxu0 0
    %884 = vmatpush2.bf16.xpose.msra.mxu0 0
    %885 = vmatprep.subr.bf16.mxu0 0
    %886 = vmatpush2.bf16.xpose.msra.mxu0 0
    %887 = vmatprep.mubr.bf16.mxu0 %v227
    %888 = vmatmul.mubr.bf16.gmra.mxu0 %v226
    %v889 = vpop.f32.mrf.mxu0
    %v890 = vadd.f32 %v850, %v889
    %v891 = vpop.f32.mrf.mxu0
    %v892 = vpop.f32.mrf.mxu0
    %v893 = vpop.f32.mrf.mxu0
    %894 = vdwg.mxu0
    %895 = vmatprep.subr.bf16.mxu0 0
    %896 = vmatpush1.bf16.xpose.msra.mxu0 0
    %897 = vmatprep.subr.bf16.mxu0 0
    %898 = vmatpush1.bf16.xpose.msra.mxu0 0
    %899 = vmatprep.subr.bf16.mxu0 0
    %900 = vmatpush1.bf16.xpose.msra.mxu0 0
    %901 = vmatprep.subr.bf16.mxu0 0
    %902 = vmatpush1.bf16.xpose.msra.mxu0 0
    %903 = vmatprep.subr.bf16.mxu0 0
    %904 = vmatpush1.bf16.xpose.msra.mxu0 0
    %905 = vmatprep.subr.bf16.mxu0 0
    %906 = vmatpush1.bf16.xpose.msra.mxu0 0
    %907 = vmatprep.subr.bf16.mxu0 0
    %908 = vmatpush1.bf16.xpose.msra.mxu0 0
    %909 = vmatprep.subr.bf16.mxu0 %v325
    %910 = vmatpush1.bf16.xpose.msra.mxu0 %v324
    %911 = vmatprep.subr.bf16.mxu0 0
    %912 = vmatpush2.bf16.xpose.msra.mxu0 0
    %913 = vmatprep.subr.bf16.mxu0 0
    %914 = vmatpush2.bf16.xpose.msra.mxu0 0
    %915 = vmatprep.subr.bf16.mxu0 0
    %916 = vmatpush2.bf16.xpose.msra.mxu0 0
    %917 = vmatprep.subr.bf16.mxu0 0
    %918 = vmatpush2.bf16.xpose.msra.mxu0 0
    %919 = vmatprep.subr.bf16.mxu0 0
    %920 = vmatpush2.bf16.xpose.msra.mxu0 0
    %921 = vmatprep.subr.bf16.mxu0 0
    %922 = vmatpush2.bf16.xpose.msra.mxu0 0
    %923 = vmatprep.subr.bf16.mxu0 0
    %924 = vmatpush2.bf16.xpose.msra.mxu0 0
    %925 = vmatprep.subr.bf16.mxu0 0
    %926 = vmatpush2.bf16.xpose.msra.mxu0 0
    %927 = vmatprep.mubr.bf16.mxu0 %v229
    %928 = vmatmul.mubr.bf16.gmra.mxu0 %v228
    %v929 = vpop.f32.mrf.mxu0
    %v930 = vadd.f32 %v890, %v929
    %v931 = vpop.f32.mrf.mxu0
    %v932 = vpop.f32.mrf.mxu0
    %v933 = vpop.f32.mrf.mxu0
    %934 = vdwg.mxu0
    %935 = vmatprep.subr.bf16.mxu0 0
    %936 = vmatpush1.bf16.xpose.msra.mxu0 0
    %937 = vmatprep.subr.bf16.mxu0 0
    %938 = vmatpush1.bf16.xpose.msra.mxu0 0
    %939 = vmatprep.subr.bf16.mxu0 0
    %940 = vmatpush1.bf16.xpose.msra.mxu0 0
    %941 = vmatprep.subr.bf16.mxu0 0
    %942 = vmatpush1.bf16.xpose.msra.mxu0 0
    %943 = vmatprep.subr.bf16.mxu0 0
    %944 = vmatpush1.bf16.xpose.msra.mxu0 0
    %945 = vmatprep.subr.bf16.mxu0 0
    %946 = vmatpush1.bf16.xpose.msra.mxu0 0
    %947 = vmatprep.subr.bf16.mxu0 0
    %948 = vmatpush1.bf16.xpose.msra.mxu0 0
    %949 = vmatprep.subr.bf16.mxu0 %v327
    %950 = vmatpush1.bf16.xpose.msra.mxu0 %v326
    %951 = vmatprep.subr.bf16.mxu0 0
    %952 = vmatpush2.bf16.xpose.msra.mxu0 0
    %953 = vmatprep.subr.bf16.mxu0 0
    %954 = vmatpush2.bf16.xpose.msra.mxu0 0
    %955 = vmatprep.subr.bf16.mxu0 0
    %956 = vmatpush2.bf16.xpose.msra.mxu0 0
    %957 = vmatprep.subr.bf16.mxu0 0
    %958 = vmatpush2.bf16.xpose.msra.mxu0 0
    %959 = vmatprep.subr.bf16.mxu0 0
    %960 = vmatpush2.bf16.xpose.msra.mxu0 0
    %961 = vmatprep.subr.bf16.mxu0 0
    %962 = vmatpush2.bf16.xpose.msra.mxu0 0
    %963 = vmatprep.subr.bf16.mxu0 0
    %964 = vmatpush2.bf16.xpose.msra.mxu0 0
    %965 = vmatprep.subr.bf16.mxu0 0
    %966 = vmatpush2.bf16.xpose.msra.mxu0 0
    %967 = vmatprep.mubr.bf16.mxu0 %v231
    %968 = vmatmul.mubr.bf16.gmra.mxu0 %v230
    %v969 = vpop.f32.mrf.mxu0
    %v970 = vadd.f32 %v930, %v969
    %v971 = vpop.f32.mrf.mxu0
    %v972 = vpop.f32.mrf.mxu0
    %v973 = vpop.f32.mrf.mxu0
    %974 = vdwg.mxu0
    %vm975 = vcmask 74752
    %976 = vst.msk [vmem:[#allocation2] sm:$0x3] %vm975, %v970
    // Predicated region
    $region14: #{client_classifier_forward.1} parent=1 // pred_check
      _
    $region15: #{client_classifier_forward.1} parent=1 // pred_check_branch
      %978 = sbr.rel (0) target = $region17
    $region16: #{client_classifier_forward.1} parent=1 // pred_region
      %s980 = ssub.s32 32, 32
      %981 = vsyncadd [#allocation3], %s980
      %s983 = sshll.u32 [#allocation2], 4
      %s984 = int_to_ptr.vmem [resolvable:$true] %s983
      %986 = dma.vmem_to_hbm [thread:$0]  %s984, 32, %s3, [#allocation3]
    $region17: #{client_classifier_forward.1} parent=1 // pred_fallthru
      _
    // Predicated region
    $region18: #{client_classifier_forward.1} parent=1 // pred_check
      _
    $region19: #{client_classifier_forward.1} parent=1 // pred_check_branch
      %988 = sbr.rel (0) target = $region21
    $region20: #{client_classifier_forward.1} parent=1 // pred_region
      %989 = dma.done [#allocation3], 32
    $region21: #{client_classifier_forward.1} parent=1 // pred_fallthru
      _
    %990 = vsyncpa [#allocation3], 1

</llo_original>
